<compile_context>
chip_gen: v5e
topology: v5e:2x2
jax: 0.10.0
libtpu: 0.0.40
codegen_flags: <defaults>
</compile_context>

<pallas_src>
import functools

import jax
import jax.numpy as jnp
from jax import lax
from jax.experimental import pallas as pl
from jax.experimental.pallas import tpu as pltpu

_LANES = 128


def _round_up(x, m):
    return (x + m - 1) // m * m


def _vmem_limit_bytes():
    """~48 MiB on 64-MiB-VMEM chips (v7x), ~100 MiB on 128-MiB chips (v5e/v6e)."""
    cap = None
    try:
        cap = getattr(pltpu.get_tpu_info(), "vmem_capacity_bytes", None)
    except Exception:
        cap = None
    if cap is None or cap <= 64 * 1024 * 1024:
        return 48 * 1024 * 1024
    return 100 * 1024 * 1024


def _clip_mutation_kernel(scale_ref, text_ref, gnn_ref, coords_ref, mask_ref,
                          out_ref, *, n_chunk):
    """One (Bt batch-elements) x (Tt sequence positions) tile.

    text_ref   : (Bt, M1, Tt, D) native dtype (f32 or bf16)
    gnn_ref    : (Bt, N_pad, D)  native dtype (same block across all T steps)
    coords_ref : (Bt, 1, Tt)     int32   (T on lanes)
    mask_ref   : (Bt, 1, Tt)     f32     (T on lanes)
    scale_ref  : (1,)            f32 in SMEM
    out_ref    : (1, Bt, 128)    f32 resident accumulator across the T axis:
                 lane0 = masked loss sum, lane1 = masked #correct, lane2 = count
    """
    Bt, M1, Tt, D = text_ref.shape
    N = gnn_ref.shape[1]
    n_chunks = N // n_chunk

    t_idx = pl.program_id(1)

    @pl.when(t_idx == 0)
    def _():
        out_ref[...] = jnp.zeros_like(out_ref)

    scale = scale_ref[0]                                   # scalar f32 (SMEM)
    coords = coords_ref[...]                               # (Bt, 1, Tt) int32
    mask = mask_ref[...].astype(jnp.float32)               # (Bt, 1, Tt)

    # --- gather: sel[b,t,:] = gnn[b, coords[b,t], :] via N-chunked one-hot ---
    # One-hot kept in the native (bf16/f32) dtype: 0/1 is exact, accumulation
    # on the MXU is f32. Iota is built once (1, Nc, Tt) and broadcast.
    gdtype = gnn_ref.dtype
    iota_nt = lax.broadcasted_iota(jnp.int32, (1, n_chunk, Tt), 1)

    if n_chunks == 1:
        onehot = (iota_nt == coords).astype(gdtype)        # (Bt, N, Tt)
        sel = jnp.einsum('bnt,bnd->btd', onehot, gnn_ref[...],
                         preferred_element_type=jnp.float32)     # (Bt, Tt, D) f32
    else:
        def gather_chunk(c, acc):
            base = pl.multiple_of(c * n_chunk, n_chunk)
            gnn_c = gnn_ref[:, pl.ds(base, n_chunk), :]    # (Bt, Nc, D) native
            onehot = ((iota_nt + base) == coords).astype(gdtype)   # (Bt, Nc, Tt)
            return acc + jnp.einsum('bnt,bnd->btd', onehot, gnn_c,
                                    preferred_element_type=jnp.float32)

        sel = lax.fori_loop(0, n_chunks, gather_chunk,
                            jnp.zeros((Bt, Tt, D), jnp.float32), unroll=True)

    # --- scores z[b,m,t] = <text[b,m,t,:], sel[b,t,:]> * logit_scale ---------
    # Stream the mutation axis with a fori_loop (bounded liveness: a single
    # (Bt,1,Tt,D) f32 slab is live per iteration).
    m_iota = lax.broadcasted_iota(jnp.int32, (1, M1, 1), 1)

    def score_m(m, z):
        txt_m = text_ref[:, pl.ds(m, 1), :, :].astype(jnp.float32)   # (Bt,1,Tt,D)
        zm = jnp.sum(txt_m * sel[:, None, :, :], axis=-1)            # (Bt,1,Tt)
        return z + jnp.where(m_iota == m, zm, 0.0)

    z = lax.fori_loop(0, M1, score_m,
                      jnp.zeros((Bt, M1, Tt), jnp.float32), unroll=True)
    z = z * scale                                          # (Bt, M1, Tt)

    # --- cross entropy w.r.t. class 0 along the mutation axis ----------------
    zmax = jnp.max(z, axis=1, keepdims=True)               # (Bt, 1, Tt)
    lse = jnp.log(jnp.sum(jnp.exp(z - zmax), axis=1, keepdims=True)) + zmax
    loss_t = lse - z[:, 0:1, :]                            # (Bt, 1, Tt)
    # argmax over mutations == 0 (first-occurrence ties: z[0] attains the max)
    correct_t = (z[:, 0:1, :] >= zmax).astype(jnp.float32)

    # --- masked per-batch partial sums (division deferred to the epilogue) ---
    cnt = jnp.sum(mask, axis=2)                            # (Bt, 1)
    loss_sum = jnp.sum(mask * loss_t, axis=2)              # (Bt, 1)
    corr_sum = jnp.sum(mask * correct_t, axis=2)           # (Bt, 1)

    lane = lax.broadcasted_iota(jnp.int32, (Bt, _LANES), 1)
    packed = (jnp.where(lane == 0, loss_sum, 0.0)
              + jnp.where(lane == 1, corr_sum, 0.0)
              + jnp.where(lane == 2, cnt, 0.0))
    out_ref[...] = out_ref[...] + packed[None].astype(jnp.float32)


def clip_mutation_loss_all(gnn_features, text_features, logit_scale,
                           seq_to_coords, seq_loss_mask, num_mutations):
    """Pallas implementation of CLIPMutationLoss.forward_all."""
    B, N, D = gnn_features.shape
    M1 = num_mutations + 1
    T = seq_to_coords.shape[1]

    # Native-dtype DMA (bf16 stays bf16 in HBM/VMEM); up-cast per-slice in-kernel.
    text = text_features.reshape(B, M1, T, D)
    gnn = gnn_features
    coords = seq_to_coords.astype(jnp.int32).reshape(B, 1, T)
    mask = seq_loss_mask.astype(jnp.float32).reshape(B, 1, T)
    scale = jnp.asarray(logit_scale, jnp.float32).reshape(1)

    # ---- tiling choices ------------------------------------------------------
    # T axis: Tt positions per grid step; multiple of 128 when tiling is needed
    # so the (Bt, 1, Tt) coords/mask blocks stay lane-aligned.
    T8 = _round_up(T, 8)
    if T8 <= 512:
        Tt, T_pad = T8, T8
    else:
        Tt = 512
        T_pad = _round_up(T, Tt)

    # N axis: in-kernel chunking of the one-hot gather.
    if N <= 512:
        Nc = _round_up(N, 8)
        N_pad = Nc
    else:
        Nc = 512
        N_pad = _round_up(N, Nc)

    # ---- VMEM-budget-driven Bt ----------------------------------------------
    vmem_limit = _vmem_limit_bytes()
    itx = text.dtype.itemsize
    ign = gnn.dtype.itemsize
    per_b_block = M1 * Tt * D * itx + N_pad * D * ign + 2 * Tt * 4
    per_b_interm = (2 * Tt * D * 4             # sel + current txt_m slab (f32)
                    + 2 * M1 * Tt * 4          # z + softmax temporaries
                    + Nc * Tt * (ign + 4))     # one-hot chunk + iota/compare
    budget = int(vmem_limit * 0.8)

    bt_max = max(1, min(B, 32))
    if B >= 2:
        bt_max = min(bt_max, (B + 1) // 2)     # >= 2 B-steps -> v7x megacore
    Bt = 1
    for cand in range(bt_max, 0, -1):
        if 2 * cand * per_b_block + cand * per_b_interm <= budget:
            Bt = cand
            break

    B_pad = _round_up(B, Bt)
    grid_b = B_pad // Bt
    grid_t = T_pad // Tt
    grid = (grid_b, grid_t)

    # Zero-pad: padded positions have mask 0 (zero contribution); padded batch
    # rows are sliced off in the epilogue; padded gnn rows are never selected.
    if (B_pad, T_pad, N_pad) != (B, T, N):
        text = jnp.pad(text, ((0, B_pad - B), (0, 0), (0, T_pad - T), (0, 0)))
        gnn = jnp.pad(gnn, ((0, B_pad - B), (0, N_pad - N), (0, 0)))
        coords = jnp.pad(coords, ((0, B_pad - B), (0, 0), (0, T_pad - T)))
        mask = jnp.pad(mask, ((0, B_pad - B), (0, 0), (0, T_pad - T)))

    cost = pl.CostEstimate(
        flops=int(B_pad * T_pad * (2 * N_pad * D + 2 * M1 * D)),
        transcendentals=int(B_pad * (M1 + 1) * T_pad),
        bytes_accessed=int(text.size * itx + gnn.size * ign
                           + coords.size * 4 + mask.size * 4
                           + grid_b * Bt * _LANES * 4),
    )

    kernel = functools.partial(_clip_mutation_kernel, n_chunk=Nc)

    packed = pl.pallas_call(
        kernel,
        grid=grid,
        in_specs=[
            pl.BlockSpec(memory_space=pltpu.MemorySpace.SMEM),             # logit_scale
            pl.BlockSpec((Bt, M1, Tt, D), lambda b, t: (b, 0, t, 0)),      # text (T-tiled)
            pl.BlockSpec((Bt, N_pad, D), lambda b, t: (b, 0, 0)),          # gnn (constant over T)
            pl.BlockSpec((Bt, 1, Tt), lambda b, t: (b, 0, t)),             # coords (T on lanes)
            pl.BlockSpec((Bt, 1, Tt), lambda b, t: (b, 0, t)),             # mask   (T on lanes)
        ],
        out_specs=pl.BlockSpec((1, Bt, _LANES), lambda b, t: (b, 0, 0)),   # resident over T
        out_shape=jax.ShapeDtypeStruct((grid_b, Bt, _LANES), jnp.float32),
        compiler_params=pltpu.CompilerParams(
            dimension_semantics=("parallel", "arbitrary"),
            vmem_limit_bytes=vmem_limit,
        ),
        cost_estimate=cost,
    )(scale, text, gnn, coords, mask)

    # Tiny epilogue in plain JAX: per-batch normalization + B reduction.
    packed = packed.reshape(B_pad, _LANES)[:B]
    loss_sum_b = packed[:, 0]
    corr_sum_b = packed[:, 1]
    cnt_b = packed[:, 2]
    loss = jnp.sum(loss_sum_b / jnp.maximum(cnt_b, 1.0)) / B
    acc = jnp.sum(corr_sum_b) / jnp.sum(cnt_b)
    return loss, acc


def _reference_all(gnn, text, scale, coords, mask_bool, num_mutations):
    """Pure-JAX reference mirroring the PyTorch forward_all."""
    B, N, D = gnn.shape
    M1 = num_mutations + 1
    T = coords.shape[1]
    unflat = text.reshape(B, M1, T, D).astype(jnp.float32)
    gnn = gnn.astype(jnp.float32)
    sel = jnp.take_along_axis(gnn, coords[:, :, None], axis=1)            # (B, T, D)
    scores = jnp.einsum('bmtd,btd->bmt', unflat, sel) * scale             # (B, M1, T)
    logp = jax.nn.log_softmax(scores, axis=1)
    loss_bt = -logp[:, 0, :]                                              # (B, T)
    maskf = mask_bool.astype(jnp.float32)
    cnt = maskf.sum(axis=1, keepdims=True)
    loss = jnp.sum(maskf * loss_bt / jnp.maximum(cnt, 1.0)) / B
    correct = (jnp.argmax(scores, axis=1) == 0).astype(jnp.float32)       # (B, T)
    acc = jnp.sum(maskf * correct) / jnp.sum(maskf)
    return loss, acc


if __name__ == "__main__":
    # Small deterministic shapes consistent with the module's forward_all.
    B, N, D, T = 2, 16, 32, 8
    num_mutations = 3
    M1 = num_mutations + 1

    key = jax.random.PRNGKey(0)
    k1, k2, k3, k4 = jax.random.split(key, 4)

    gnn_features = jax.random.normal(k1, (B, N, D), dtype=jnp.float32)
    text_features = jax.random.normal(k2, (B * M1, T, D), dtype=jnp.float32)  # flattened, as in PyTorch
    seq_to_coords = jax.random.randint(k3, (B, T), 0, N, dtype=jnp.int32)
    seq_loss_mask = jax.random.bernoulli(k4, 0.7, (B, T))
    seq_loss_mask = seq_loss_mask.at[:, 0].set(True)  # at least one valid position per row
    logit_scale = jnp.float32(2.5)

    # --- f32 path: tight check against the pure-JAX reference ---
    loss, acc = clip_mutation_loss_all(
        gnn_features, text_features, logit_scale, seq_to_coords, seq_loss_mask, num_mutations
    )
    loss, acc = jax.block_until_ready((loss, acc))

    ref_loss, ref_acc = _reference_all(
        gnn_features, text_features, logit_scale, seq_to_coords, seq_loss_mask, num_mutations
    )
    assert jnp.allclose(loss, ref_loss, rtol=1e-5, atol=1e-5), (loss, ref_loss)
    assert jnp.allclose(acc, ref_acc, rtol=1e-5, atol=1e-5), (acc, ref_acc)

    # --- bf16 path: exercises native-dtype DMA + bf16 MXU gather (loose check) ---
    loss_bf16, acc_bf16 = clip_mutation_loss_all(
        gnn_features.astype(jnp.bfloat16), text_features.astype(jnp.bfloat16),
        logit_scale, seq_to_coords, seq_loss_mask, num_mutations
    )
    loss_bf16, acc_bf16 = jax.block_until_ready((loss_bf16, acc_bf16))
    assert jnp.isfinite(loss_bf16) and jnp.isfinite(acc_bf16)
    assert jnp.abs(loss_bf16 - ref_loss) < 0.2, (loss_bf16, ref_loss)

    print("KERNEL_OK")
</pallas_src>

<mosaic_0001>
module attributes {stable_mosaic.version = 11 : i64} {
  func.func @_clip_mutation_kernel(%arg0: i32, %arg1: i32, %arg2: memref<1xf32, #tpu.memory_space<smem>>, %arg3: memref<1x4x8x32xf32, #tpu.memory_space<vmem>>, %arg4: memref<1x16x32xf32, #tpu.memory_space<vmem>>, %arg5: memref<1x1x8xi32, #tpu.memory_space<vmem>>, %arg6: memref<1x1x8xf32, #tpu.memory_space<vmem>>, %arg7: memref<1x1x128xf32, #tpu.memory_space<vmem>>) attributes {dimension_semantics = [#tpu.dimension_semantics<parallel>, #tpu.dimension_semantics<arbitrary>], iteration_bounds = array<i64: 2, 1>, scalar_prefetch = 0 : i64, scratch_operands = 0 : i64, tpu.core_type = #tpu.core_type<tc>, window_params = [{transform_indices = @transform_0, window_bounds = array<i64: 1>}, {transform_indices = @transform_1, window_bounds = array<i64: 1, 4, 8, 32>}, {transform_indices = @transform_2, window_bounds = array<i64: 1, 16, 32>}, {transform_indices = @transform_3, window_bounds = array<i64: 1, 1, 8>}, {transform_indices = @transform_4, window_bounds = array<i64: 1, 1, 8>}, {transform_indices = @transform_5, window_bounds = array<i64: 1, 1, 128>}]} {
    %c0_i32 = arith.constant 0 : i32
    %0 = arith.cmpi eq, %arg1, %c0_i32 : i32
    %1 = arith.extui %0 : i1 to i32
    %c0_i32_0 = arith.constant 0 : i32
    %2 = arith.cmpi ne, %1, %c0_i32_0 : i32
    scf.if %2 {
      %cst_49 = arith.constant 0.000000e+00 : f32
      %118 = vector.broadcast %cst_49 : f32 to vector<1x1x128xf32>
      %c0_50 = arith.constant 0 : index
      %c0_51 = arith.constant 0 : index
      %c0_52 = arith.constant 0 : index
      %119 = vector.load %arg7[%c0_50, %c0_51, %c0_52] : memref<1x1x128xf32, #tpu.memory_space<vmem>>, vector<1x1x128xf32>
      tpu.vector_store %arg7[%c0_50, %c0_51, %c0_52], %118 {strides = array<i32>} : memref<1x1x128xf32, #tpu.memory_space<vmem>>, vector<1x1x128xf32>,
    } else {
    }
    %c0 = arith.constant 0 : index
    %3 = memref.load %arg2[%c0] : memref<1xf32, #tpu.memory_space<smem>>
    %c0_1 = arith.constant 0 : index
    %c0_2 = arith.constant 0 : index
    %c0_3 = arith.constant 0 : index
    %4 = vector.load %arg5[%c0_1, %c0_2, %c0_3] : memref<1x1x8xi32, #tpu.memory_space<vmem>>, vector<1x1x8xi32>
    %c0_4 = arith.constant 0 : index
    %c0_5 = arith.constant 0 : index
    %c0_6 = arith.constant 0 : index
    %5 = vector.load %arg6[%c0_4, %c0_5, %c0_6] : memref<1x1x8xf32, #tpu.memory_space<vmem>>, vector<1x1x8xf32>
    %6 = tpu.iota {dimensions = array<i32: 1>} : vector<1x16x8xi32>
    %7 = vector.broadcast %4 : vector<1x1x8xi32> to vector<1x16x8xi32>
    %8 = arith.cmpi eq, %6, %7 : vector<1x16x8xi32>
    %9 = arith.extui %8 : vector<1x16x8xi1> to vector<1x16x8xi32>
    %10 = arith.sitofp %9 : vector<1x16x8xi32> to vector<1x16x8xf32>
    %c0_7 = arith.constant 0 : index
    %c0_8 = arith.constant 0 : index
    %c0_9 = arith.constant 0 : index
    %11 = vector.load %arg4[%c0_7, %c0_8, %c0_9] : memref<1x16x32xf32, #tpu.memory_space<vmem>>, vector<1x16x32xf32>
    "tpu.trace_start"() <{level = 10 : i32, message = "bnt,bnd->btd"}> : () -> ()
    %cst = arith.constant dense<0.000000e+00> : vector<1x8x32xf32>
    %12 = tpu.matmul %10, %11, %cst {dimension_numbers = #tpu.dot_dimension_numbers<[1], [1], [2], [2], [0, 0, 0, 2, 1, 2], [0], [0]>} : vector<1x16x8xf32>, vector<1x16x32xf32>, vector<1x8x32xf32> -> vector<1x8x32xf32>
    "tpu.trace_stop"() : () -> ()
    %13 = tpu.iota {dimensions = array<i32: 1>} : vector<1x4x1xi32>
    %cst_10 = arith.constant 0.000000e+00 : f32
    %14 = vector.broadcast %cst_10 : f32 to vector<1x4x8xf32>
    %c0_i32_11 = arith.constant 0 : i32
    %c0_12 = arith.constant 0 : index
    %15 = arith.index_cast %c0_i32_11 : i32 to index
    %c0_13 = arith.constant 0 : index
    %c0_14 = arith.constant 0 : index
    %16 = vector.load %arg3[%c0_12, %15, %c0_13, %c0_14] : memref<1x4x8x32xf32, #tpu.memory_space<vmem>>, vector<1x1x8x32xf32>
    %17 = vector.shape_cast %12 : vector<1x8x32xf32> to vector<1x1x8x32xf32>
    %18 = arith.mulf %16, %17 : vector<1x1x8x32xf32>
    %cst_15 = arith.constant dense<0.000000e+00> : vector<1x1x8xf32>
    %19 = vector.multi_reduction <add>, %18, %cst_15 [3] : vector<1x1x8x32xf32> to vector<1x1x8xf32>
    %20 = vector.broadcast %c0_i32_11 : i32 to vector<1x4x1xi32>
    %21 = arith.cmpi eq, %13, %20 : vector<1x4x1xi32>
    %cst_16 = arith.constant 0.000000e+00 : f32
    %22 = vector.shape_cast %21 : vector<1x4x1xi1> to vector<1x4x1xi1>
    %23 = vector.broadcast %22 : vector<1x4x1xi1> to vector<1x4x8xi1>
    %24 = vector.shape_cast %19 : vector<1x1x8xf32> to vector<1x1x8xf32>
    %25 = vector.broadcast %24 : vector<1x1x8xf32> to vector<1x4x8xf32>
    %26 = vector.broadcast %cst_16 : f32 to vector<1x4x8xf32>
    %27 = arith.select %23, %25, %26 : vector<1x4x8xi1>, vector<1x4x8xf32>
    %28 = arith.addf %14, %27 : vector<1x4x8xf32>
    %c1_i32 = arith.constant 1 : i32
    %c0_17 = arith.constant 0 : index
    %29 = arith.index_cast %c1_i32 : i32 to index
    %c0_18 = arith.constant 0 : index
    %c0_19 = arith.constant 0 : index
    %30 = vector.load %arg3[%c0_17, %29, %c0_18, %c0_19] : memref<1x4x8x32xf32, #tpu.memory_space<vmem>>, vector<1x1x8x32xf32>
    %31 = vector.shape_cast %12 : vector<1x8x32xf32> to vector<1x1x8x32xf32>
    %32 = arith.mulf %30, %31 : vector<1x1x8x32xf32>
    %cst_20 = arith.constant dense<0.000000e+00> : vector<1x1x8xf32>
    %33 = vector.multi_reduction <add>, %32, %cst_20 [3] : vector<1x1x8x32xf32> to vector<1x1x8xf32>
    %34 = vector.broadcast %c1_i32 : i32 to vector<1x4x1xi32>
    %35 = arith.cmpi eq, %13, %34 : vector<1x4x1xi32>
    %cst_21 = arith.constant 0.000000e+00 : f32
    %36 = vector.shape_cast %35 : vector<1x4x1xi1> to vector<1x4x1xi1>
    %37 = vector.broadcast %36 : vector<1x4x1xi1> to vector<1x4x8xi1>
    %38 = vector.shape_cast %33 : vector<1x1x8xf32> to vector<1x1x8xf32>
    %39 = vector.broadcast %38 : vector<1x1x8xf32> to vector<1x4x8xf32>
    %40 = vector.broadcast %cst_21 : f32 to vector<1x4x8xf32>
    %41 = arith.select %37, %39, %40 : vector<1x4x8xi1>, vector<1x4x8xf32>
    %42 = arith.addf %28, %41 : vector<1x4x8xf32>
    %c2_i32 = arith.constant 2 : i32
    %c0_22 = arith.constant 0 : index
    %43 = arith.index_cast %c2_i32 : i32 to index
    %c0_23 = arith.constant 0 : index
    %c0_24 = arith.constant 0 : index
    %44 = vector.load %arg3[%c0_22, %43, %c0_23, %c0_24] : memref<1x4x8x32xf32, #tpu.memory_space<vmem>>, vector<1x1x8x32xf32>
    %45 = vector.shape_cast %12 : vector<1x8x32xf32> to vector<1x1x8x32xf32>
    %46 = arith.mulf %44, %45 : vector<1x1x8x32xf32>
    %cst_25 = arith.constant dense<0.000000e+00> : vector<1x1x8xf32>
    %47 = vector.multi_reduction <add>, %46, %cst_25 [3] : vector<1x1x8x32xf32> to vector<1x1x8xf32>
    %48 = vector.broadcast %c2_i32 : i32 to vector<1x4x1xi32>
    %49 = arith.cmpi eq, %13, %48 : vector<1x4x1xi32>
    %cst_26 = arith.constant 0.000000e+00 : f32
    %50 = vector.shape_cast %49 : vector<1x4x1xi1> to vector<1x4x1xi1>
    %51 = vector.broadcast %50 : vector<1x4x1xi1> to vector<1x4x8xi1>
    %52 = vector.shape_cast %47 : vector<1x1x8xf32> to vector<1x1x8xf32>
    %53 = vector.broadcast %52 : vector<1x1x8xf32> to vector<1x4x8xf32>
    %54 = vector.broadcast %cst_26 : f32 to vector<1x4x8xf32>
    %55 = arith.select %51, %53, %54 : vector<1x4x8xi1>, vector<1x4x8xf32>
    %56 = arith.addf %42, %55 : vector<1x4x8xf32>
    %c3_i32 = arith.constant 3 : i32
    %c0_27 = arith.constant 0 : index
    %57 = arith.index_cast %c3_i32 : i32 to index
    %c0_28 = arith.constant 0 : index
    %c0_29 = arith.constant 0 : index
    %58 = vector.load %arg3[%c0_27, %57, %c0_28, %c0_29] : memref<1x4x8x32xf32, #tpu.memory_space<vmem>>, vector<1x1x8x32xf32>
    %59 = vector.shape_cast %12 : vector<1x8x32xf32> to vector<1x1x8x32xf32>
    %60 = arith.mulf %58, %59 : vector<1x1x8x32xf32>
    %cst_30 = arith.constant dense<0.000000e+00> : vector<1x1x8xf32>
    %61 = vector.multi_reduction <add>, %60, %cst_30 [3] : vector<1x1x8x32xf32> to vector<1x1x8xf32>
    %62 = vector.broadcast %c3_i32 : i32 to vector<1x4x1xi32>
    %63 = arith.cmpi eq, %13, %62 : vector<1x4x1xi32>
    %cst_31 = arith.constant 0.000000e+00 : f32
    %64 = vector.shape_cast %63 : vector<1x4x1xi1> to vector<1x4x1xi1>
    %65 = vector.broadcast %64 : vector<1x4x1xi1> to vector<1x4x8xi1>
    %66 = vector.shape_cast %61 : vector<1x1x8xf32> to vector<1x1x8xf32>
    %67 = vector.broadcast %66 : vector<1x1x8xf32> to vector<1x4x8xf32>
    %68 = vector.broadcast %cst_31 : f32 to vector<1x4x8xf32>
    %69 = arith.select %65, %67, %68 : vector<1x4x8xi1>, vector<1x4x8xf32>
    %70 = arith.addf %56, %69 : vector<1x4x8xf32>
    %c4_i32 = arith.constant 4 : i32
    %71 = vector.broadcast %3 : f32 to vector<1x4x8xf32>
    %72 = arith.mulf %70, %71 : vector<1x4x8xf32>
    %cst_32 = arith.constant dense<0xFF800000> : vector<1x8xf32>
    %73 = vector.multi_reduction <maximumf>, %72, %cst_32 [1] : vector<1x4x8xf32> to vector<1x8xf32>
    %74 = vector.shape_cast %73 : vector<1x8xf32> to vector<1x1x8xf32>
    %75 = vector.broadcast %74 : vector<1x1x8xf32> to vector<1x4x8xf32>
    %76 = arith.subf %72, %75 : vector<1x4x8xf32>
    %77 = math.exp %76 : vector<1x4x8xf32>
    %cst_33 = arith.constant dense<0.000000e+00> : vector<1x8xf32>
    %78 = vector.multi_reduction <add>, %77, %cst_33 [1] : vector<1x4x8xf32> to vector<1x8xf32>
    %79 = vector.shape_cast %78 : vector<1x8xf32> to vector<1x1x8xf32>
    %80 = math.log %79 : vector<1x1x8xf32>
    %81 = arith.addf %80, %74 : vector<1x1x8xf32>
    %82 = vector.extract_strided_slice %72 {offsets = [0, 0, 0], sizes = [1, 1, 8], strides = [1, 1, 1]} : vector<1x4x8xf32> to vector<1x1x8xf32>
    %83 = arith.subf %81, %82 : vector<1x1x8xf32>
    %84 = vector.extract_strided_slice %72 {offsets = [0, 0, 0], sizes = [1, 1, 8], strides = [1, 1, 1]} : vector<1x4x8xf32> to vector<1x1x8xf32>
    %85 = arith.cmpf oge, %84, %74 : vector<1x1x8xf32>
    %86 = arith.extui %85 : vector<1x1x8xi1> to vector<1x1x8xi32>
    %87 = arith.sitofp %86 : vector<1x1x8xi32> to vector<1x1x8xf32>
    %cst_34 = arith.constant dense<0.000000e+00> : vector<1x1xf32>
    %88 = vector.multi_reduction <add>, %5, %cst_34 [2] : vector<1x1x8xf32> to vector<1x1xf32>
    %89 = arith.mulf %5, %83 : vector<1x1x8xf32>
    %cst_35 = arith.constant dense<0.000000e+00> : vector<1x1xf32>
    %90 = vector.multi_reduction <add>, %89, %cst_35 [2] : vector<1x1x8xf32> to vector<1x1xf32>
    %91 = arith.mulf %5, %87 : vector<1x1x8xf32>
    %cst_36 = arith.constant dense<0.000000e+00> : vector<1x1xf32>
    %92 = vector.multi_reduction <add>, %91, %cst_36 [2] : vector<1x1x8xf32> to vector<1x1xf32>
    %93 = tpu.iota {dimensions = array<i32: 1>} : vector<1x128xi32>
    %c0_i32_37 = arith.constant 0 : i32
    %94 = vector.broadcast %c0_i32_37 : i32 to vector<1x128xi32>
    %95 = arith.cmpi eq, %93, %94 : vector<1x128xi32>
    %cst_38 = arith.constant 0.000000e+00 : f32
    %96 = vector.shape_cast %90 : vector<1x1xf32> to vector<1x1xf32>
    %97 = vector.broadcast %96 : vector<1x1xf32> to vector<1x128xf32>
    %98 = vector.broadcast %cst_38 : f32 to vector<1x128xf32>
    %99 = arith.select %95, %97, %98 : vector<1x128xi1>, vector<1x128xf32>
    %c1_i32_39 = arith.constant 1 : i32
    %100 = vector.broadcast %c1_i32_39 : i32 to vector<1x128xi32>
    %101 = arith.cmpi eq, %93, %100 : vector<1x128xi32>
    %cst_40 = arith.constant 0.000000e+00 : f32
    %102 = vector.shape_cast %92 : vector<1x1xf32> to vector<1x1xf32>
    %103 = vector.broadcast %102 : vector<1x1xf32> to vector<1x128xf32>
    %104 = vector.broadcast %cst_40 : f32 to vector<1x128xf32>
    %105 = arith.select %101, %103, %104 : vector<1x128xi1>, vector<1x128xf32>
    %106 = arith.addf %99, %105 : vector<1x128xf32>
    %c2_i32_41 = arith.constant 2 : i32
    %107 = vector.broadcast %c2_i32_41 : i32 to vector<1x128xi32>
    %108 = arith.cmpi eq, %93, %107 : vector<1x128xi32>
    %cst_42 = arith.constant 0.000000e+00 : f32
    %109 = vector.shape_cast %88 : vector<1x1xf32> to vector<1x1xf32>
    %110 = vector.broadcast %109 : vector<1x1xf32> to vector<1x128xf32>
    %111 = vector.broadcast %cst_42 : f32 to vector<1x128xf32>
    %112 = arith.select %108, %110, %111 : vector<1x128xi1>, vector<1x128xf32>
    %113 = arith.addf %106, %112 : vector<1x128xf32>
    %c0_43 = arith.constant 0 : index
    %c0_44 = arith.constant 0 : index
    %c0_45 = arith.constant 0 : index
    %114 = vector.load %arg7[%c0_43, %c0_44, %c0_45] : memref<1x1x128xf32, #tpu.memory_space<vmem>>, vector<1x1x128xf32>
    %115 = vector.shape_cast %113 : vector<1x128xf32> to vector<1x1x128xf32>
    %116 = arith.addf %114, %115 : vector<1x1x128xf32>
    %c0_46 = arith.constant 0 : index
    %c0_47 = arith.constant 0 : index
    %c0_48 = arith.constant 0 : index
    %117 = vector.load %arg7[%c0_46, %c0_47, %c0_48] : memref<1x1x128xf32, #tpu.memory_space<vmem>>, vector<1x1x128xf32>
    tpu.vector_store %arg7[%c0_46, %c0_47, %c0_48], %116 {strides = array<i32>} : memref<1x1x128xf32, #tpu.memory_space<vmem>>, vector<1x1x128xf32>,
    return
  }
  func.func @transform_0(%arg0: i32, %arg1: i32) -> i32 {
    %c0_i32 = arith.constant 0 : i32
    %c0_i32_0 = arith.constant 0 : i32
    return %c0_i32 : i32
  }
  func.func @transform_1(%arg0: i32, %arg1: i32) -> (i32, i32, i32, i32) {
    %c0_i32 = arith.constant 0 : i32
    %c0_i32_0 = arith.constant 0 : i32
    %c0_i32_1 = arith.constant 0 : i32
    return %arg0, %c0_i32, %arg1, %c0_i32_0 : i32, i32, i32, i32
  }
  func.func @transform_2(%arg0: i32, %arg1: i32) -> (i32, i32, i32) {
    %c0_i32 = arith.constant 0 : i32
    %c0_i32_0 = arith.constant 0 : i32
    %c0_i32_1 = arith.constant 0 : i32
    return %arg0, %c0_i32, %c0_i32_0 : i32, i32, i32
  }
  func.func @transform_3(%arg0: i32, %arg1: i32) -> (i32, i32, i32) {
    %c0_i32 = arith.constant 0 : i32
    %c0_i32_0 = arith.constant 0 : i32
    return %arg0, %c0_i32, %arg1 : i32, i32, i32
  }
  func.func @transform_4(%arg0: i32, %arg1: i32) -> (i32, i32, i32) {
    %c0_i32 = arith.constant 0 : i32
    %c0_i32_0 = arith.constant 0 : i32
    return %arg0, %c0_i32, %arg1 : i32, i32, i32
  }
  func.func @transform_5(%arg0: i32, %arg1: i32) -> (i32, i32, i32) {
    %c0_i32 = arith.constant 0 : i32
    %c0_i32_0 = arith.constant 0 : i32
    %c0_i32_1 = arith.constant 0 : i32
    return %arg0, %c0_i32, %c0_i32_0 : i32, i32, i32
  }
}

</mosaic_0001>

<llo_original>
// kernel: tpu_custom_call.1
$region0: #{tpu_custom_call.1}
  #allocation0 [shape = 'u32[]', space=smem, size = 0x4, offset = 0x4, fixed_abs, tag = 'smem constant byte address 0x4 - core index']
  #allocation1 [shape = 'u32[72,128]{1,0:T(1,128)}', space=vmem, size = 0x9000, scoped, tag = 'internal scratch']
  #allocation2 [shape = 'f32[1]{0:T(128)S(6)}', space=smem, size = 0x200, scoped, tag = 'scoped memory for tpu_custom_call.1']
  %s0 = inlined_call_operand.<no memory space> [shape: f32[1], index: 0, kind: input, shape index: {}]
  %s1 = inlined_call_operand.hbm [shape: f32[2,4,8,32], index: 1, kind: input, shape index: {}]
  %s2 = inlined_call_operand.hbm [shape: f32[2,16,32], index: 2, kind: input, shape index: {}]
  %s3 = inlined_call_operand.vmem [shape: s32[2,1,8], index: 3, kind: input, shape index: {}]
  %s4 = inlined_call_operand.vmem [shape: f32[2,1,8], index: 4, kind: input, shape index: {}]
  %s5 = inlined_call_operand.hbm [shape: f32[2,1,128], index: 5, kind: output, shape index: {}]
  %s6 = sld [smem:[#allocation0]]
  $region65: #{tpu_custom_call.1} parent=0
    _
  %s8 = ssub.s32 1, %s6
  %s9 = scalar_select 0, %s8, %s6
  %10 = sst [smem:[#allocation2]] %s0
  $region1: #{tpu_custom_call.1} parent=0
    #allocation3 [shape = 'u8[32768]{0}', space=vmem, size = 0x8000, scoped, tag = 'input window, operand 1']
    #allocation4 [shape = 's32[2]{0}', space=sflag, size = 0x8, scoped, tag = 'scoped memory for tpu_custom_call.1']
    #allocation5 [shape = 's32[2]{0}', space=sflag, size = 0x8, scoped, tag = 'scoped memory for tpu_custom_call.1']
    #allocation6 [shape = 'u8[16384]{0}', space=vmem, size = 0x4000, scoped, tag = 'input window, operand 2']
    #allocation7 [shape = 's32[2]{0}', space=sflag, size = 0x8, scoped, tag = 'scoped memory for tpu_custom_call.1']
    #allocation8 [shape = 'u8[1024]{0}', space=vmem, size = 0x400, scoped, tag = 'output window, operand 0']
    %11 = vsyncpa [#allocation4], 0
    %s12 = scalar_lea.sflag [#allocation4], 1
    %13 = vsyncpa %s12, 0
    %14 = vsyncpa [#allocation7], 0
    %s15 = scalar_lea.sflag [#allocation7], 1
    %16 = vsyncpa %s15, 0
    %17 = vsyncpa [#allocation5], 0
    %s18 = scalar_lea.sflag [#allocation5], 1
    %19 = vsyncpa %s18, 0
    loop: start=0, step=1, limit=4
    $region2: #{tpu_custom_call.1} parent=1 // loop_pre_header
      _
    $region3: #{tpu_custom_call.1} parent=1 // loop_header
      %s21 = sphi 0, %s25
      %p22 = scmp.ge.s32.totalorder %s21, 4
      %s28 = sphi 0, %s40
      %s29 = sphi 0, %s36
      %s30 = sphi 0, %s28
      %s31 = sphi 0, %s29
      %s32 = sphi 0, %s30
      %s33 = sphi 0, %s31
      %s41 = sphi 0, %s41
      %s43 = sphi 0, %s41
      %s44 = sphi 0, %s43
      %s58 = sphi 0, %s44
      %s66 = sphi 0, %s68
      %s69 = sphi 0, %s66
      %s70 = sphi 0, %s69
      %s86 = sphi 0, %s70
      %s92 = sphi 0, %s94
      %s95 = sphi 0, %s92
      %s96 = sphi 0, %s95
      %s112 = sphi 0, %s96
      %s120 = sphi 0, %s122
      %s123 = sphi 0, %s120
      %s124 = sphi 0, %s123
      %s140 = sphi 0, %s124
      %s148 = sphi 0, %s150
      %s151 = sphi 0, %s148
      %s152 = sphi 0, %s151
      %s168 = sphi 0, %s152
      %s174 = sphi 0, %s176
      %s177 = sphi 0, %s174
      %s178 = sphi 0, %s177
      %s194 = sphi 0, %s178
    $region4: #{tpu_custom_call.1} parent=1 // loop_header_branch
      %24 = sbr.rel (%p22) target = $region8
    $region5: #{tpu_custom_call.1} parent=1 // loop_body
      %s26 = ssub.s32 %s21, 1
      %s27 = ssub.s32 %s21, 2
      %s34 = sadd.s32 1, %s29
      %p35 = scmp.ge.s32.totalorder %s34, 1
      %s36 = scalar_select %p35, 0, %s34
      %s37 = sadd.s32 1, %s28
      %s38 = scalar_select %p35, %s37, %s28
      %p39 = scmp.ge.s32.totalorder %s38, 2
      %s40 = scalar_select %p39, 0, %s38
      %s42 = sadd.s32 %s41, 1
      %p45 = scmp.eq.s32.totalorder %s21, 1
      %p46 = scmp.ne.s32.totalorder %s41, %s43
      %p47 = scmp.eq.s32.totalorder %s21, 0
      %p48 = por %p46, %p47
      %p49 = scmp.ne.s32.totalorder %s41, %s43
      %p50 = scmp.eq.s32.totalorder %s26, 1
      %p51 = por %p49, %p50
      %p52 = scmp.ne.s32.totalorder %s43, %s44
      %p53 = scmp.eq.s32.totalorder %s26, 0
      %p54 = por %p52, %p53
      %p55 = scmp.ne.s32.totalorder %s43, %s44
      %p56 = scmp.eq.s32.totalorder %s27, 1
      %p57 = por %p55, %p56
      %p59 = scmp.ne.s32.totalorder %s44, %s58
      %p60 = scmp.eq.s32.totalorder %s27, 0
      %p61 = por %p59, %p60
      %s62 = ssub.s32 %s28, %s40
      %s63 = ssub.s32 %s29, %s36
      %s64 = sor.u32 %s62, %s63
      %p65 = scmp.eq.s32.totalorder %s64, 0
      %s67 = sadd.s32 %s66, 1
      %s68 = scalar_select %p65, %s66, %s67
      %p71 = pneg %p65
      %p72 = scmp.eq.s32.totalorder %s21, 1
      %p73 = por %p71, %p72
      %p74 = scmp.ne.s32.totalorder %s66, %s69
      %p75 = scmp.eq.s32.totalorder %s21, 0
      %p76 = por %p74, %p75
      %p77 = scmp.ne.s32.totalorder %s66, %s69
      %p78 = scmp.eq.s32.totalorder %s26, 1
      %p79 = por %p77, %p78
      %p80 = scmp.ne.s32.totalorder %s69, %s70
      %p81 = scmp.eq.s32.totalorder %s26, 0
      %p82 = por %p80, %p81
      %p83 = scmp.ne.s32.totalorder %s69, %s70
      %p84 = scmp.eq.s32.totalorder %s27, 1
      %p85 = por %p83, %p84
      %p87 = scmp.ne.s32.totalorder %s70, %s86
      %p88 = scmp.eq.s32.totalorder %s27, 0
      %p89 = por %p87, %p88
      %s90 = ssub.s32 %s28, %s40
      %p91 = scmp.eq.s32.totalorder %s90, 0
      %s93 = sadd.s32 %s92, 1
      %s94 = scalar_select %p91, %s92, %s93
      %p97 = pneg %p91
      %p98 = scmp.eq.s32.totalorder %s21, 1
      %p99 = por %p97, %p98
      %p100 = scmp.ne.s32.totalorder %s92, %s95
      %p101 = scmp.eq.s32.totalorder %s21, 0
      %p102 = por %p100, %p101
      %p103 = scmp.ne.s32.totalorder %s92, %s95
      %p104 = scmp.eq.s32.totalorder %s26, 1
      %p105 = por %p103, %p104
      %p106 = scmp.ne.s32.totalorder %s95, %s96
      %p107 = scmp.eq.s32.totalorder %s26, 0
      %p108 = por %p106, %p107
      %p109 = scmp.ne.s32.totalorder %s95, %s96
      %p110 = scmp.eq.s32.totalorder %s27, 1
      %p111 = por %p109, %p110
      %p113 = scmp.ne.s32.totalorder %s96, %s112
      %p114 = scmp.eq.s32.totalorder %s27, 0
      %p115 = por %p113, %p114
      %s116 = ssub.s32 %s28, %s40
      %s117 = ssub.s32 %s29, %s36
      %s118 = sor.u32 %s116, %s117
      %p119 = scmp.eq.s32.totalorder %s118, 0
      %s121 = sadd.s32 %s120, 1
      %s122 = scalar_select %p119, %s120, %s121
      %p125 = pneg %p119
      %p126 = scmp.eq.s32.totalorder %s21, 1
      %p127 = por %p125, %p126
      %p128 = scmp.ne.s32.totalorder %s120, %s123
      %p129 = scmp.eq.s32.totalorder %s21, 0
      %p130 = por %p128, %p129
      %p131 = scmp.ne.s32.totalorder %s120, %s123
      %p132 = scmp.eq.s32.totalorder %s26, 1
      %p133 = por %p131, %p132
      %p134 = scmp.ne.s32.totalorder %s123, %s124
      %p135 = scmp.eq.s32.totalorder %s26, 0
      %p136 = por %p134, %p135
      %p137 = scmp.ne.s32.totalorder %s123, %s124
      %p138 = scmp.eq.s32.totalorder %s27, 1
      %p139 = por %p137, %p138
      %p141 = scmp.ne.s32.totalorder %s124, %s140
      %p142 = scmp.eq.s32.totalorder %s27, 0
      %p143 = por %p141, %p142
      %s144 = ssub.s32 %s28, %s40
      %s145 = ssub.s32 %s29, %s36
      %s146 = sor.u32 %s144, %s145
      %p147 = scmp.eq.s32.totalorder %s146, 0
      %s149 = sadd.s32 %s148, 1
      %s150 = scalar_select %p147, %s148, %s149
      %p153 = pneg %p147
      %p154 = scmp.eq.s32.totalorder %s21, 1
      %p155 = por %p153, %p154
      %p156 = scmp.ne.s32.totalorder %s148, %s151
      %p157 = scmp.eq.s32.totalorder %s21, 0
      %p158 = por %p156, %p157
      %p159 = scmp.ne.s32.totalorder %s148, %s151
      %p160 = scmp.eq.s32.totalorder %s26, 1
      %p161 = por %p159, %p160
      %p162 = scmp.ne.s32.totalorder %s151, %s152
      %p163 = scmp.eq.s32.totalorder %s26, 0
      %p164 = por %p162, %p163
      %p165 = scmp.ne.s32.totalorder %s151, %s152
      %p166 = scmp.eq.s32.totalorder %s27, 1
      %p167 = por %p165, %p166
      %p169 = scmp.ne.s32.totalorder %s152, %s168
      %p170 = scmp.eq.s32.totalorder %s27, 0
      %p171 = por %p169, %p170
      %s172 = ssub.s32 %s28, %s40
      %p173 = scmp.eq.s32.totalorder %s172, 0
      %s175 = sadd.s32 %s174, 1
      %s176 = scalar_select %p173, %s174, %s175
      %p179 = pneg %p173
      %p180 = scmp.eq.s32.totalorder %s21, 1
      %p181 = por %p179, %p180
      %p182 = scmp.ne.s32.totalorder %s174, %s177
      %p183 = scmp.eq.s32.totalorder %s21, 0
      %p184 = por %p182, %p183
      %p185 = scmp.ne.s32.totalorder %s174, %s177
      %p186 = scmp.eq.s32.totalorder %s26, 1
      %p187 = por %p185, %p186
      %p188 = scmp.ne.s32.totalorder %s177, %s178
      %p189 = scmp.eq.s32.totalorder %s26, 0
      %p190 = por %p188, %p189
      %p191 = scmp.ne.s32.totalorder %s177, %s178
      %p192 = scmp.eq.s32.totalorder %s27, 1
      %p193 = por %p191, %p192
      %p195 = scmp.ne.s32.totalorder %s178, %s194
      %p196 = scmp.eq.s32.totalorder %s27, 0
      %p197 = por %p195, %p196
      %p198 = scmp.le.s32.totalorder 1, %s21
      %p199 = scmp.lt.s32.totalorder %s21, 3
      %p200 = pnand %p198, %p199
      %p201 = pneg %p200
      // Predicated region
      $region9: #{tpu_custom_call.1} parent=5 // pred_check
        _
      $region10: #{tpu_custom_call.1} parent=5 // pred_check_branch
        %203 = sbr.rel (%p200) target = $region12
      $region11: #{tpu_custom_call.1} parent=5 // pred_region
        %s204 = ssub.s32 %s21, 1
        // Predicated region
        $region13: #{tpu_custom_call.1} parent=11 // pred_check
          %p205 = pneg %p54
        $region14: #{tpu_custom_call.1} parent=11 // pred_check_branch
          %207 = sbr.rel (%p205) target = $region16
        $region15: #{tpu_custom_call.1} parent=11 // pred_region
          _
        $region16: #{tpu_custom_call.1} parent=11 // pred_fallthru
          _
      $region12: #{tpu_custom_call.1} parent=5 // pred_fallthru
        _
      %p208 = scmp.lt.s32.totalorder %s21, 2
      // Predicated region
      $region17: #{tpu_custom_call.1} parent=5 // pred_check
        %p209 = pneg %p208
      $region18: #{tpu_custom_call.1} parent=5 // pred_check_branch
        %211 = sbr.rel (%p209) target = $region20
      $region19: #{tpu_custom_call.1} parent=5 // pred_region
        // Predicated region
        $region21: #{tpu_custom_call.1} parent=19 // pred_check
          %p212 = pneg %p76
        $region22: #{tpu_custom_call.1} parent=19 // pred_check_branch
          %214 = sbr.rel (%p212) target = $region24
        $region23: #{tpu_custom_call.1} parent=19 // pred_region
          %s215 = sand.u32 %s66, 1
          %s216 = scalar_lea.sflag [#allocation4], %s215
          %s217 = sand.u32 %s66, 1
          %s218 = smul.addr %s217, 32
          %s219 = scalar_lea.vmem [#allocation3], %s218
          %221 = vsyncadd %s216, 0
          %s222 = smul.addr %s28, 4
          %s223 = sadd.s32 %s29, %s222
          %s224 = smul.addr %s223, 8
          %s225 = scalar_lea.hbm %s1, %s224
          %s226 = sshll.u32 %s225, 4
          %s227 = int_to_ptr.hbm [resolvable:$true] %s226
          %s228 = sshll.u32 %s219, 4
          %s229 = int_to_ptr.vmem [resolvable:$true] %s228
          %234 = dma.hbm_to_vmem [thread:$0]  %s227, 512, %s229, %s216, 128, 128, 8
        $region24: #{tpu_custom_call.1} parent=19 // pred_fallthru
          _
        // Predicated region
        $region25: #{tpu_custom_call.1} parent=19 // pred_check
          %p235 = pneg %p102
        $region26: #{tpu_custom_call.1} parent=19 // pred_check_branch
          %237 = sbr.rel (%p235) target = $region28
        $region27: #{tpu_custom_call.1} parent=19 // pred_region
          %s238 = sand.u32 %s92, 1
          %s239 = scalar_lea.sflag [#allocation7], %s238
          %s240 = sand.u32 %s92, 1
          %s241 = smul.addr %s240, 16
          %s242 = scalar_lea.vmem [#allocation6], %s241
          %244 = vsyncadd %s239, 0
          %s245 = smul.addr %s28, 2
          %s246 = smul.addr %s245, 8
          %s247 = scalar_lea.hbm %s2, %s246
          %s248 = sshll.u32 %s247, 4
          %s249 = int_to_ptr.hbm [resolvable:$true] %s248
          %s250 = sshll.u32 %s242, 4
          %s251 = int_to_ptr.vmem [resolvable:$true] %s250
          %256 = dma.hbm_to_vmem [thread:$0]  %s249, 256, %s251, %s239, 128, 128, 8
        $region28: #{tpu_custom_call.1} parent=19 // pred_fallthru
          _
        // Predicated region
        $region29: #{tpu_custom_call.1} parent=19 // pred_check
          %p257 = pneg %p130
        $region30: #{tpu_custom_call.1} parent=19 // pred_check_branch
          %259 = sbr.rel (%p257) target = $region32
        $region31: #{tpu_custom_call.1} parent=19 // pred_region
          %p260 = scmp.lt.s32.totalorder %s28, 1
          %s261 = scalar_select %p260, %s28, 1
          %p262 = scmp.lt.s32.totalorder %s29, 0
          %s263 = scalar_select %p262, %s29, 0
          %s264 = sadd.s32 %s263, %s261
          %s265 = scalar_lea.vmem %s3, %s264
        $region32: #{tpu_custom_call.1} parent=19 // pred_fallthru
          _
        // Predicated region
        $region33: #{tpu_custom_call.1} parent=19 // pred_check
          %p266 = pneg %p158
        $region34: #{tpu_custom_call.1} parent=19 // pred_check_branch
          %268 = sbr.rel (%p266) target = $region36
        $region35: #{tpu_custom_call.1} parent=19 // pred_region
          %p269 = scmp.lt.s32.totalorder %s28, 1
          %s270 = scalar_select %p269, %s28, 1
          %p271 = scmp.lt.s32.totalorder %s29, 0
          %s272 = scalar_select %p271, %s29, 0
          %s273 = sadd.s32 %s272, %s270
          %s274 = scalar_lea.vmem %s4, %s273
        $region36: #{tpu_custom_call.1} parent=19 // pred_fallthru
          _
      $region20: #{tpu_custom_call.1} parent=5 // pred_fallthru
        _
      %p275 = scmp.le.s32.totalorder 1, %s21
      %p276 = scmp.lt.s32.totalorder %s21, 3
      %p277 = pnand %p275, %p276
      %p278 = pneg %p277
      // Predicated region
      $region37: #{tpu_custom_call.1} parent=5 // pred_check
        _
      $region38: #{tpu_custom_call.1} parent=5 // pred_check_branch
        %280 = sbr.rel (%p277) target = $region40
      $region39: #{tpu_custom_call.1} parent=5 // pred_region
        %s281 = ssub.s32 %s21, 1
        %s282 = sand.u32 %s69, 1
        %s283 = scalar_lea.sflag [#allocation4], %s282
        %s284 = sand.u32 %s69, 1
        %s285 = smul.addr %s284, 32
        %s286 = scalar_lea.vmem [#allocation3], %s285
        // Predicated region
        $region41: #{tpu_custom_call.1} parent=39 // pred_check
          %p287 = pneg %p82
        $region42: #{tpu_custom_call.1} parent=39 // pred_check_branch
          %289 = sbr.rel (%p287) target = $region44
        $region43: #{tpu_custom_call.1} parent=39 // pred_region
          %291 = dma.done %s283, 512
        $region44: #{tpu_custom_call.1} parent=39 // pred_fallthru
          _
        %s292 = sand.u32 %s95, 1
        %s293 = scalar_lea.sflag [#allocation7], %s292
        %s294 = sand.u32 %s95, 1
        %s295 = smul.addr %s294, 16
        %s296 = scalar_lea.vmem [#allocation6], %s295
        // Predicated region
        $region45: #{tpu_custom_call.1} parent=39 // pred_check
          %p297 = pneg %p108
        $region46: #{tpu_custom_call.1} parent=39 // pred_check_branch
          %299 = sbr.rel (%p297) target = $region48
        $region47: #{tpu_custom_call.1} parent=39 // pred_region
          %301 = dma.done %s293, 256
        $region48: #{tpu_custom_call.1} parent=39 // pred_fallthru
          _
        %p302 = pneg %p54
        %p303 = pneg %p51
        %s304 = sand.u32 %s69, 1
        %s305 = scalar_lea.sflag [#allocation4], %s304
        %s306 = sand.u32 %s69, 1
        %s307 = smul.addr %s306, 32
        %s308 = scalar_lea.vmem [#allocation3], %s307
        %p309 = pneg %p82
        %p310 = pneg %p79
        %s311 = sand.u32 %s95, 1
        %s312 = scalar_lea.sflag [#allocation7], %s311
        %s313 = sand.u32 %s95, 1
        %s314 = smul.addr %s313, 16
        %s315 = scalar_lea.vmem [#allocation6], %s314
        %p316 = pneg %p108
        %p317 = pneg %p105
        %p318 = scmp.lt.s32.totalorder %s30, 1
        %s319 = scalar_select %p318, %s30, 1
        %p320 = scmp.lt.s32.totalorder %s31, 0
        %s321 = scalar_select %p320, %s31, 0
        %s322 = sadd.s32 %s321, %s319
        %s323 = scalar_lea.vmem %s3, %s322
        %p324 = pneg %p136
        %p325 = pneg %p133
        %p326 = scmp.lt.s32.totalorder %s30, 1
        %s327 = scalar_select %p326, %s30, 1
        %p328 = scmp.lt.s32.totalorder %s31, 0
        %s329 = scalar_select %p328, %s31, 0
        %s330 = sadd.s32 %s329, %s327
        %s331 = scalar_lea.vmem %s4, %s330
        %p332 = pneg %p164
        %p333 = pneg %p161
        %p334 = pneg %p190
        %p335 = pneg %p187
        %s336 = sand.u32 %s177, 1
        %s337 = scalar_lea.sflag [#allocation5], %s336
        %s338 = sand.u32 %s177, 1
        %s339 = scalar_lea.vmem [#allocation8], %s338
        %p340 = scmp.lt.s32.totalorder %s30, 1
        %s341 = scalar_select %p340, %s30, 1
        %p342 = scmp.lt.s32.totalorder %s31, 0
        %s343 = scalar_select %p342, %s31, 0
        %s344 = sadd.s32 %s343, %s341
        %s345 = scalar_lea.vmem %s3, %s344
        %p346 = scmp.lt.s32.totalorder %s30, 1
        %s347 = scalar_select %p346, %s30, 1
        %p348 = scmp.lt.s32.totalorder %s31, 0
        %s349 = scalar_select %p348, %s31, 0
        %s350 = sadd.s32 %s349, %s347
        %s351 = scalar_lea.vmem %s4, %s350
        %p352 = scmp.eq.s32.totalorder %s31, 0
        // Predicated region
        $region49: #{tpu_custom_call.1} parent=39 // pred_check
          %p353 = pneg %p352
        $region50: #{tpu_custom_call.1} parent=39 // pred_check_branch
          %355 = sbr.rel (%p353) target = $region52
        $region51: #{tpu_custom_call.1} parent=39 // pred_region
          %356 = vst [vmem:[%s339] sm:$0x1] 0.0
        $region52: #{tpu_custom_call.1} parent=39 // pred_fallthru
          _
        %s357 = sld [smem:[#allocation2]]
        %v358 = vld [vmem:[%s345] sm:$0x1]
        %v359 = vld [vmem:[%s351] sm:$0x1]
        %v360 = vlaneseq
        %v361 = vshrl.u32 %v360, 7
        %v362 = vadd.s32 %v361, 8
        %v363 = vperm.slane %v358, 0
        %vm364 = vcmp.eq.s32.totalorder %v361, %v363
        %vm365 = vcmp.eq.s32.totalorder %v362, %v363
        %v366 = vsel %vm364, 1, 0
        %v367 = vsel %vm365, 1, 0
        %v368 = vcvt.s32.f32 %v366
        %v369 = vcvt.s32.f32 %v367
        %v370 = vld [vmem:[%s296] sm:$0xff]
        %v371 = vld [vmem:[%s296 + $0x8] sm:$0xff]
        %372 = vxpose.xlu0.b32.start [1/16] %v368, 128
        %373 = vxpose.xlu0.b32.cont [2/16] %v369, 128
        %374 = vxpose.xlu0.b32.cont [3/16] 0.0, 128
        %375 = vxpose.xlu0.b32.cont [4/16] 0.0, 128
        %376 = vxpose.xlu0.b32.cont [5/16] 0.0, 128
        %377 = vxpose.xlu0.b32.cont [6/16] 0.0, 128
        %378 = vxpose.xlu0.b32.cont [7/16] 0.0, 128
        %379 = vxpose.xlu0.b32.cont [8/16] 0.0, 128
        %380 = vxpose.xlu0.b32.cont [9/16] 0.0, 128
        %381 = vxpose.xlu0.b32.cont [10/16] 0.0, 128
        %382 = vxpose.xlu0.b32.cont [11/16] 0.0, 128
        %383 = vxpose.xlu0.b32.cont [12/16] 0.0, 128
        %384 = vxpose.xlu0.b32.cont [13/16] 0.0, 128
        %385 = vxpose.xlu0.b32.cont [14/16] 0.0, 128
        %386 = vxpose.xlu0.b32.cont [15/16] 0.0, 128
        %387 = vxpose.xlu0.b32.end [16/16] 0.0, 128
        %v388 = vpop.trf.xlu0
        %v389 = vpop.trf.xlu0
        %v390 = vpop.trf.xlu0
        %v391 = vpop.trf.xlu0
        %v392 = vpop.trf.xlu0
        %v393 = vpop.trf.xlu0
        %v394 = vpop.trf.xlu0
        %v395 = vpop.trf.xlu0
        %v396 = vpop.trf.xlu0
        %v397 = vpop.trf.xlu0
        %v398 = vpop.trf.xlu0
        %v399 = vpop.trf.xlu0
        %v400 = vpop.trf.xlu0
        %v401 = vpop.trf.xlu0
        %v402 = vpop.trf.xlu0
        %v403 = vpop.trf.xlu0
        %vm404 = vcmask 130048
        %v406 = vsel %vm404, %v388, 0
        %408 = vmatpush.msra.mxu0 0.0
        %409 = vmatpush.msra.mxu0 0.0
        %410 = vmatpush.msra.mxu0 0.0
        %411 = vmatpush.msra.mxu0 0.0
        %412 = vmatpush.msra.mxu0 0.0
        %413 = vmatpush.msra.mxu0 0.0
        %414 = vmatpush.msra.mxu0 0.0
        %415 = vmatpush.msra.mxu0 0.0
        %416 = vmatpush.msra.mxu0 0.0
        %417 = vmatpush.msra.mxu0 0.0
        %418 = vmatpush.msra.mxu0 0.0
        %419 = vmatpush.msra.mxu0 0.0
        %420 = vmatpush.msra.mxu0 0.0
        %421 = vmatpush.msra.mxu0 0.0
        %422 = vmatpush.msra.mxu0 %v371
        %423 = vmatpush.msra.mxu0 %v370
        %424 = vmatmul.f32.gmra.mxu0 %v406
        %v425 = vpop.f32.mrf.mxu0
        %v426 = vadd.f32 0.0, %v425
        %427 = vdwg.mxu0
        %v428 = vld [vmem:[%s286] sm:$0xff]
        %v429 = vmul.f32 %v428, %v426
        %vm430 = vcmask 261120
        %v431 = vsel %vm430, %v429, 0.0
        %432 = vadd.xlane.f32.xlu0 %v431
        %v433 = vpop.xlane.xlu0 %432
        %vm434 = vcmp.eq.s32.totalorder %v361, 0
        %v435 = vsel %vm434, 1, 0
        %vm436 = vcmp.eq.s32.totalorder %v435, 1
        %v438 = vlaneseq
        %v439 = vand.u32 %v438, 127
        %v440 = vperm.slane %v433, %v439
        %vm441 = vcmask 1042434
        %v442 = vsel %vm441, %v440, %v440
        %vm443 = vcmask 1043459
        %v444 = vsel %vm443, %v440, %v442
        %v446 = vsel %vm436, %v444, 0.0
        %v447 = vadd.f32 %v446, 0.0
        %s448 = scalar_lea.vmem %s286, 8 [#allocation3]
        %v449 = vld [vmem:[%s448] sm:$0xff]
        %v450 = vmul.f32 %v449, %v426
        %v451 = vsel %vm430, %v450, 0.0
        %452 = vadd.xlane.f32.xlu0 %v451
        %v453 = vpop.xlane.xlu0 %452
        %vm454 = vcmp.eq.s32.totalorder %v361, 1
        %v455 = vsel %vm454, 1, 0
        %vm456 = vcmp.eq.s32.totalorder %v455, 1
        %v458 = vperm.slane %v453, %v439
        %v459 = vsel %vm441, %v458, %v458
        %v460 = vsel %vm443, %v458, %v459
        %v462 = vsel %vm456, %v460, 0.0
        %v463 = vadd.f32 %v447, %v462
        %s464 = scalar_lea.vmem %s286, 16 [#allocation3]
        %v465 = vld [vmem:[%s464] sm:$0xff]
        %v466 = vmul.f32 %v465, %v426
        %v467 = vsel %vm430, %v466, 0.0
        %468 = vadd.xlane.f32.xlu0 %v467
        %v469 = vpop.xlane.xlu0 %468
        %vm470 = vcmp.eq.s32.totalorder %v361, 2
        %v471 = vsel %vm470, 1, 0
        %vm472 = vcmp.eq.s32.totalorder %v471, 1
        %v474 = vperm.slane %v469, %v439
        %v475 = vsel %vm441, %v474, %v474
        %v476 = vsel %vm443, %v474, %v475
        %v478 = vsel %vm472, %v476, 0.0
        %v479 = vadd.f32 %v463, %v478
        %s480 = scalar_lea.vmem %s286, 24 [#allocation3]
        %v481 = vld [vmem:[%s480] sm:$0xff]
        %v482 = vmul.f32 %v481, %v426
        %v483 = vsel %vm430, %v482, 0.0
        %484 = vadd.xlane.f32.xlu0 %v483
        %v485 = vpop.xlane.xlu0 %484
        %vm486 = vcmp.eq.s32.totalorder %v361, 3
        %v487 = vsel %vm486, 1, 0
        %vm488 = vcmp.eq.s32.totalorder %v487, 1
        %v490 = vperm.slane %v485, %v439
        %v491 = vsel %vm441, %v490, %v490
        %v492 = vsel %vm443, %v490, %v491
        %v494 = vsel %vm488, %v492, 0.0
        %v495 = vadd.f32 %v479, %v494
        %v496 = vstv %s357
        %v497 = vmul.f32 %v495, %v496
        %vm498 = vcmask 60416
        %v499 = vsel %vm498, %v497, -inf
        %v500 = vrot.slane %v499, 4
        %v501 = vmax.f32 %v499, %v500
        %v502 = vrot.slane %v501, 2
        %v503 = vmax.f32 %v501, %v502
        %v504 = vrot.slane %v503, 1
        %v505 = vmax.f32 %v503, %v504
        %v506 = vsub.f32 %v497, %v505
        %v507 = vmul.f32 %v506, 1.442695
        %v508 = vpow.pop %v507
        %v509 = vsel %vm498, %v508, 0.0
        %v510 = vrot.slane %v509, 4
        %v511 = vadd.f32 %v509, %v510
        %v512 = vrot.slane %v511, 2
        %v513 = vadd.f32 %v511, %v512
        %v514 = vrot.slane %v513, 1
        %v515 = vadd.f32 %v513, %v514
        %v516 = vlog2.pop %v515
        %v517 = vmul.f32 %v516, 0.6931472
        %v518 = vadd.f32 %v517, %v505
        %v519 = vsub.f32 %v518, %v497
        %vm520 = vcmp.ge.f32.partialorder %v497, %v505
        %v521 = vsel %vm520, 1, 0
        %v522 = vcvt.s32.f32 %v521
        %vm523 = vcmask 57344
        %v524 = vsel %vm523, %v359, 0.0
        %525 = vadd.xlane.f32.xlu0 %v524
        %v526 = vpop.xlane.xlu0 %525
        %v527 = vmul.f32 %v359, %v519
        %v528 = vsel %vm523, %v527, 0.0
        %529 = vadd.xlane.f32.xlu0 %v528
        %v530 = vpop.xlane.xlu0 %529
        %v531 = vmul.f32 %v359, %v522
        %v532 = vsel %vm523, %v531, 0.0
        %533 = vadd.xlane.f32.xlu0 %v532
        %v534 = vpop.xlane.xlu0 %533
        %vm535 = vcmp.eq.s32.totalorder %v439, 0
        %v536 = vsel %vm535, %v530, 0.0
        %vm537 = vcmp.eq.s32.totalorder %v439, 1
        %v538 = vsel %vm537, %v534, 0.0
        %v539 = vadd.f32 %v536, %v538
        %vm540 = vcmp.eq.s32.totalorder %v439, 2
        %v541 = vsel %vm540, %v526, 0.0
        %v542 = vadd.f32 %v539, %v541
        %v543 = vld [vmem:[%s339] sm:$0x1]
        %v544 = vadd.f32 %v543, %v542
        %545 = vst [vmem:[%s339] sm:$0x1] %v544
        %s546 = sand.u32 %s177, 1
        %s547 = scalar_lea.sflag [#allocation5], %s546
        %s548 = sand.u32 %s177, 1
        %s549 = scalar_lea.vmem [#allocation8], %s548
        // Predicated region
        $region53: #{tpu_custom_call.1} parent=39 // pred_check
          %p550 = pneg %p187
        $region54: #{tpu_custom_call.1} parent=39 // pred_check_branch
          %552 = sbr.rel (%p550) target = $region56
        $region55: #{tpu_custom_call.1} parent=39 // pred_region
          %554 = vsyncadd %s547, 0
          %s555 = scalar_lea.hbm %s5, %s30
          %s557 = sshll.u32 %s549, 4
          %s558 = int_to_ptr.vmem [resolvable:$true] %s557
          %s559 = sshll.u32 %s555, 4
          %s560 = int_to_ptr.hbm [resolvable:$true] %s559
          %562 = dma.vmem_to_hbm [thread:$0]  %s558, 16, %s560, %s547
        $region56: #{tpu_custom_call.1} parent=39 // pred_fallthru
          _
      $region40: #{tpu_custom_call.1} parent=5 // pred_fallthru
        _
      %p563 = scmp.le.s32.totalorder 2, %s21
      // Predicated region
      $region57: #{tpu_custom_call.1} parent=5 // pred_check
        %p564 = pneg %p563
      $region58: #{tpu_custom_call.1} parent=5 // pred_check_branch
        %566 = sbr.rel (%p564) target = $region60
      $region59: #{tpu_custom_call.1} parent=5 // pred_region
        %s567 = ssub.s32 %s21, 2
        // Predicated region
        $region61: #{tpu_custom_call.1} parent=59 // pred_check
          %p568 = pneg %p193
        $region62: #{tpu_custom_call.1} parent=59 // pred_check_branch
          %570 = sbr.rel (%p568) target = $region64
        $region63: #{tpu_custom_call.1} parent=59 // pred_region
          %s571 = sand.u32 %s178, 1
          %s572 = scalar_lea.sflag [#allocation5], %s571
          %s573 = sand.u32 %s178, 1
          %s574 = scalar_lea.vmem [#allocation8], %s573
          %576 = dma.done %s572, 16
        $region64: #{tpu_custom_call.1} parent=59 // pred_fallthru
          _
      $region60: #{tpu_custom_call.1} parent=5 // pred_fallthru
        _
    $region6: #{tpu_custom_call.1} parent=1 // loop_footer
      %s25 = sadd.s32 1, %s21
    $region7: #{tpu_custom_call.1} parent=1 // loop_footer_branch
      %20 = sbr.rel target = $region3
    $region8: #{tpu_custom_call.1} parent=1 // loop_exit
      _
    %577 = vsyncpa [#allocation4], 1
    %s578 = scalar_lea.sflag [#allocation4], 1
    %579 = vsyncpa %s578, 1
    %580 = vsyncpa [#allocation7], 1
    %s581 = scalar_lea.sflag [#allocation7], 1
    %582 = vsyncpa %s581, 1
    %583 = vsyncpa [#allocation5], 1
    %s584 = scalar_lea.sflag [#allocation5], 1
    %585 = vsyncpa %s584, 1

</llo_original>
